<compile_context>
chip_gen: v7x
topology: tpu7x:2x2x1
jax: 0.10.0
libtpu: 0.0.40
codegen_flags: <defaults>
</compile_context>

<pallas_src>
import functools

import jax
import jax.numpy as jnp
from jax.experimental import pallas as pl
from jax.experimental.pallas import tpu as pltpu


def _anyhead_kernel(x_ref, w_ref, b_ref, o_ref, *, inv_hw):
    # x_ref: (TB, HW, C) channel-last tile
    # w_ref: (C, NCP)    b_ref: (1, NCP)    o_ref: (TB, NCP)
    # Global average pool: f32 accumulation without materializing an f32 copy of
    # the tile; fold 1/(H*W) into one scalar multiply on the small pooled tensor.
    pooled = jnp.sum(x_ref[...], axis=1, dtype=jnp.float32) * inv_hw      # (TB, C)
    out = jnp.dot(pooled, w_ref[...].astype(jnp.float32),
                  preferred_element_type=jnp.float32)                     # (TB, NCP)
    out = out + b_ref[...].astype(jnp.float32)
    o_ref[...] = out.astype(o_ref.dtype)


def any_head(x_nchw, weight, bias, *, input_tile_budget_bytes=16 << 20):
    """AnyHead forward.

    x_nchw: (B, C, H, W) activations (NCHW, torch layout)
    weight: (nc, w_in) torch nn.Linear layout
    bias:   (nc,)
    returns (B, nc)
    """
    B, C, H, W = x_nchw.shape
    nc = weight.shape[0]
    HW = H * W

    # Channel-last layout so C is the lane (last) dim for the dominant x read.
    x = jnp.transpose(x_nchw, (0, 2, 3, 1)).reshape(B, HW, C)

    # Pad nc to a lane multiple (>=128): lane-dense output stores + full MXU N.
    ncp = max(128, ((nc + 127) // 128) * 128)
    w_p = jnp.zeros((C, ncp), dtype=weight.dtype).at[:, :nc].set(weight.T)
    b_p = jnp.zeros((1, ncp), dtype=bias.dtype).at[0, :nc].set(bias)

    # Batch tile: multiple of 8 (sublane alignment of the output block) unless it
    # covers the whole batch; sized so the double-buffered input tile stays under
    # a conservative VMEM budget (fits v7x's smaller VMEM; v5e/v6e have headroom).
    itemsize = jnp.dtype(x.dtype).itemsize
    per_row = HW * C * itemsize
    tb = max(8, (input_tile_budget_bytes // max(1, 2 * per_row)) // 8 * 8)
    tb = min(tb, 512)
    if B <= tb:
        tb = B
    grid = (pl.cdiv(B, tb),)
    # TODO(synk): for extremely wide heads where even TB=8 overflows VMEM, add a
    # reduction grid axis over HW with a VMEM accumulator (pl.when init/finalize).

    out_dtype = x_nchw.dtype
    vmem_need = (2 * tb * per_row                                       # x double-buffer
                 + 2 * C * ncp * jnp.dtype(w_p.dtype).itemsize          # weights
                 + 2 * ncp * jnp.dtype(b_p.dtype).itemsize              # bias
                 + 2 * tb * ncp * jnp.dtype(out_dtype).itemsize         # output
                 + (2 << 20))                                           # slack
    vmem_limit = int(min(max(vmem_need, 8 << 20), 48 << 20))

    kernel = functools.partial(_anyhead_kernel, inv_hw=1.0 / float(HW))

    out_p = pl.pallas_call(
        kernel,
        out_shape=jax.ShapeDtypeStruct((B, ncp), out_dtype),
        grid=grid,
        in_specs=[
            pl.BlockSpec((tb, HW, C), lambda i: (i, 0, 0)),
            pl.BlockSpec((C, ncp), lambda i: (0, 0)),
            pl.BlockSpec((1, ncp), lambda i: (0, 0)),
        ],
        out_specs=pl.BlockSpec((tb, ncp), lambda i: (i, 0)),
        compiler_params=pltpu.CompilerParams(
            dimension_semantics=("parallel",),
            vmem_limit_bytes=vmem_limit,
        ),
    )(x, w_p, b_p)

    return out_p[:, :nc]


def init_params(key, w_in, nc, dtype=jnp.float32):
    # Deterministic init matching nn.Linear default: U(-1/sqrt(fan_in), 1/sqrt(fan_in))
    kw, kb = jax.random.split(key)
    bound = 1.0 / (w_in ** 0.5)
    weight = jax.random.uniform(kw, (nc, w_in), dtype, minval=-bound, maxval=bound)
    bias = jax.random.uniform(kb, (nc,), dtype, minval=-bound, maxval=bound)
    return weight, bias


if __name__ == "__main__":
    key = jax.random.PRNGKey(0)
    kx, kp = jax.random.split(key)

    B, w_in, H, W, nc = 2, 16, 8, 8, 8
    x = jax.random.normal(kx, (B, w_in, H, W), dtype=jnp.float32)
    weight, bias = init_params(kp, w_in, nc)

    out = any_head(x, weight, bias)
    out = jax.block_until_ready(out)

    # Reference check (plain JAX) of AvgPool(1,1) + Linear
    ref = jnp.mean(x, axis=(2, 3)) @ weight.T + bias
    assert out.shape == (B, nc)
    assert jnp.allclose(out, ref, atol=1e-5, rtol=1e-5), "mismatch vs reference"

    print("KERNEL_OK")
</pallas_src>

<mosaic_0001>
module attributes {stable_mosaic.version = 11 : i64} {
  func.func @_anyhead_kernel(%arg0: i32, %arg1: memref<2x64x16xf32, #tpu.memory_space<vmem>>, %arg2: memref<16x128xf32, #tpu.memory_space<vmem>>, %arg3: memref<1x128xf32, #tpu.memory_space<vmem>>, %arg4: memref<2x128xf32, #tpu.memory_space<vmem>>) attributes {dimension_semantics = [#tpu.dimension_semantics<parallel>], iteration_bounds = array<i64: 1>, scalar_prefetch = 0 : i64, scratch_operands = 0 : i64, tpu.core_type = #tpu.core_type<tc>, window_params = [{transform_indices = @transform_0, window_bounds = array<i64: 2, 64, 16>}, {pipeline_mode = #tpu.pipeline_mode<synchronous>, transform_indices = @transform_1, window_bounds = array<i64: 16, 128>}, {pipeline_mode = #tpu.pipeline_mode<synchronous>, transform_indices = @transform_2, window_bounds = array<i64: 1, 128>}, {transform_indices = @transform_3, window_bounds = array<i64: 2, 128>}]} {
    %c0 = arith.constant 0 : index
    %c0_0 = arith.constant 0 : index
    %c0_1 = arith.constant 0 : index
    %0 = vector.load %arg1[%c0, %c0_0, %c0_1] : memref<2x64x16xf32, #tpu.memory_space<vmem>>, vector<2x64x16xf32>
    %cst = arith.constant dense<0.000000e+00> : vector<2x16xf32>
    %1 = vector.multi_reduction <add>, %0, %cst [1] : vector<2x64x16xf32> to vector<2x16xf32>
    %cst_2 = arith.constant 1.562500e-02 : f32
    %2 = vector.broadcast %cst_2 : f32 to vector<2x16xf32>
    %3 = arith.mulf %1, %2 : vector<2x16xf32>
    %c0_3 = arith.constant 0 : index
    %c0_4 = arith.constant 0 : index
    %4 = vector.load %arg2[%c0_3, %c0_4] : memref<16x128xf32, #tpu.memory_space<vmem>>, vector<16x128xf32>
    %cst_5 = arith.constant dense<0.000000e+00> : vector<2x128xf32>
    %5 = tpu.matmul %3, %4, %cst_5 {dimension_numbers = #tpu.dot_dimension_numbers<[1], [0], [0], [1], [0, 0, 1, 1], [], []>} : vector<2x16xf32>, vector<16x128xf32>, vector<2x128xf32> -> vector<2x128xf32>
    %c0_6 = arith.constant 0 : index
    %c0_7 = arith.constant 0 : index
    %6 = vector.load %arg3[%c0_6, %c0_7] : memref<1x128xf32, #tpu.memory_space<vmem>>, vector<1x128xf32>
    %7 = vector.broadcast %6 : vector<1x128xf32> to vector<2x128xf32>
    %8 = arith.addf %5, %7 : vector<2x128xf32>
    %c0_8 = arith.constant 0 : index
    %c0_9 = arith.constant 0 : index
    %9 = vector.load %arg4[%c0_8, %c0_9] : memref<2x128xf32, #tpu.memory_space<vmem>>, vector<2x128xf32>
    tpu.vector_store %arg4[%c0_8, %c0_9], %8 {strides = array<i32>} : memref<2x128xf32, #tpu.memory_space<vmem>>, vector<2x128xf32>,
    return
  }
  func.func @transform_0(%arg0: i32) -> (i32, i32, i32) {
    %c0_i32 = arith.constant 0 : i32
    %c0_i32_0 = arith.constant 0 : i32
    %c0_i32_1 = arith.constant 0 : i32
    return %arg0, %c0_i32, %c0_i32_0 : i32, i32, i32
  }
  func.func @transform_1(%arg0: i32) -> (i32, i32) {
    %c0_i32 = arith.constant 0 : i32
    %c0_i32_0 = arith.constant 0 : i32
    %c0_i32_1 = arith.constant 0 : i32
    return %c0_i32, %c0_i32_0 : i32, i32
  }
  func.func @transform_2(%arg0: i32) -> (i32, i32) {
    %c0_i32 = arith.constant 0 : i32
    %c0_i32_0 = arith.constant 0 : i32
    %c0_i32_1 = arith.constant 0 : i32
    return %c0_i32, %c0_i32_0 : i32, i32
  }
  func.func @transform_3(%arg0: i32) -> (i32, i32) {
    %c0_i32 = arith.constant 0 : i32
    %c0_i32_0 = arith.constant 0 : i32
    return %arg0, %c0_i32 : i32, i32
  }
}

</mosaic_0001>

<llo_original>
// kernel: tpu_custom_call.1
$region0: #{tpu_custom_call.1}
  #allocation0 [shape = 'u32[]', space=smem, size = 0x4, offset = 0x4, fixed_abs, tag = 'smem constant byte address 0x4 - core index']
  #allocation1 [shape = 'u32[144,128]{1,0:T(1,128)}', space=vmem, size = 0x12000, scoped, tag = 'internal scratch']
  %s0 = inlined_call_operand.vmem [shape: f32[2,64,16], index: 0, kind: input, shape index: {}]
  %s1 = inlined_call_operand.vmem [shape: f32[16,128], index: 1, kind: input, shape index: {}]
  %s2 = inlined_call_operand.vmem [shape: f32[1,128], index: 2, kind: input, shape index: {}]
  %s3 = inlined_call_operand.hbm [shape: f32[2,128], index: 3, kind: output, shape index: {}]
  %s4 = sld [smem:[#allocation0]]
  $region22: #{tpu_custom_call.1} parent=0
    _
  %s6 = ssub.s32 1, %s4
  %s7 = scalar_select 0, %s6, %s4
  $region1: #{tpu_custom_call.1} parent=0
    #allocation2 [shape = 'u8[1024]{0}', space=vmem, size = 0x400, scoped, tag = 'output window, operand 0, single buffered']
    #allocation3 [shape = 's32[1]{0}', space=sflag, size = 0x4, scoped, tag = 'scoped memory for tpu_custom_call.1']
    %8 = vsyncpa [#allocation3], 0
    // Predicated region
    $region2: #{tpu_custom_call.1} parent=1 // pred_check
      _
    $region3: #{tpu_custom_call.1} parent=1 // pred_check_branch
      %10 = sbr.rel (0) target = $region5
    $region4: #{tpu_custom_call.1} parent=1 // pred_region
      _
    $region5: #{tpu_custom_call.1} parent=1 // pred_fallthru
      _
    // Predicated region
    $region6: #{tpu_custom_call.1} parent=1 // pred_check
      _
    $region7: #{tpu_custom_call.1} parent=1 // pred_check_branch
      %12 = sbr.rel (0) target = $region9
    $region8: #{tpu_custom_call.1} parent=1 // pred_region
      _
    $region9: #{tpu_custom_call.1} parent=1 // pred_fallthru
      _
    // Predicated region
    $region10: #{tpu_custom_call.1} parent=1 // pred_check
      _
    $region11: #{tpu_custom_call.1} parent=1 // pred_check_branch
      %14 = sbr.rel (0) target = $region13
    $region12: #{tpu_custom_call.1} parent=1 // pred_region
      _
    $region13: #{tpu_custom_call.1} parent=1 // pred_fallthru
      _
    %v15 = vld [vmem:[%s0] sm:$0xff]
    %v16 = vld [vmem:[%s0 + $0x8] sm:$0xff]
    %v17 = vld [vmem:[%s0 + $0x10] sm:$0xff]
    %v18 = vld [vmem:[%s0 + $0x18] sm:$0xff]
    %v19 = vld [vmem:[%s0 + $0x20] sm:$0xff]
    %v20 = vld [vmem:[%s0 + $0x28] sm:$0xff]
    %v21 = vld [vmem:[%s0 + $0x30] sm:$0xff]
    %v22 = vld [vmem:[%s0 + $0x38] sm:$0xff]
    %v23 = vld [vmem:[%s0 + $0x40] sm:$0xff]
    %v24 = vld [vmem:[%s0 + $0x48] sm:$0xff]
    %v25 = vld [vmem:[%s0 + $0x50] sm:$0xff]
    %v26 = vld [vmem:[%s0 + $0x58] sm:$0xff]
    %v27 = vld [vmem:[%s0 + $0x60] sm:$0xff]
    %v28 = vld [vmem:[%s0 + $0x68] sm:$0xff]
    %v29 = vld [vmem:[%s0 + $0x70] sm:$0xff]
    %v30 = vld [vmem:[%s0 + $0x78] sm:$0xff]
    %vm31 = vcmask 130048
    %v32 = vsel %vm31, %v15, 0.0
    %v33 = vsel %vm31, %v16, 0.0
    %v34 = vadd.f32 %v32, %v33
    %v35 = vsel %vm31, %v17, 0.0
    %v36 = vadd.f32 %v34, %v35
    %v37 = vsel %vm31, %v18, 0.0
    %v38 = vadd.f32 %v36, %v37
    %v39 = vsel %vm31, %v19, 0.0
    %v40 = vadd.f32 %v38, %v39
    %v41 = vsel %vm31, %v20, 0.0
    %v42 = vadd.f32 %v40, %v41
    %v43 = vsel %vm31, %v21, 0.0
    %v44 = vadd.f32 %v42, %v43
    %v45 = vsel %vm31, %v22, 0.0
    %v46 = vadd.f32 %v44, %v45
    %v47 = vrot.slane %v46, 4
    %v48 = vadd.f32 %v46, %v47
    %v49 = vrot.slane %v48, 2
    %v50 = vadd.f32 %v48, %v49
    %v51 = vrot.slane %v50, 1
    %v52 = vadd.f32 %v50, %v51
    %v53 = vsel %vm31, %v23, 0.0
    %v54 = vsel %vm31, %v24, 0.0
    %v55 = vadd.f32 %v53, %v54
    %v56 = vsel %vm31, %v25, 0.0
    %v57 = vadd.f32 %v55, %v56
    %v58 = vsel %vm31, %v26, 0.0
    %v59 = vadd.f32 %v57, %v58
    %v60 = vsel %vm31, %v27, 0.0
    %v61 = vadd.f32 %v59, %v60
    %v62 = vsel %vm31, %v28, 0.0
    %v63 = vadd.f32 %v61, %v62
    %v64 = vsel %vm31, %v29, 0.0
    %v65 = vadd.f32 %v63, %v64
    %v66 = vsel %vm31, %v30, 0.0
    %v67 = vadd.f32 %v65, %v66
    %v68 = vrot.slane %v67, 4
    %v69 = vadd.f32 %v67, %v68
    %v70 = vrot.slane %v69, 2
    %v71 = vadd.f32 %v69, %v70
    %v72 = vrot.slane %v71, 1
    %v73 = vadd.f32 %v71, %v72
    %v74 = vmul.f32 %v52, 0.015625
    %v75 = vmul.f32 %v73, 0.015625
    %v76 = vld [vmem:[%s1] sm:$0xff]
    %v77 = vld [vmem:[%s1 + $0x8] sm:$0xff]
    %v78 = vld [vmem:[%s2] sm:$0x1]
    %v80 = vlaneseq
    %v81 = vshrl.u32 %v80, 7
    %v82 = vsub.s32 0, %v81
    %v83 = vrot.slane %v78, %v82
    %vm87 = vcmask 1041409
    %v88 = vsel %vm87, %v75, %v74
    %v89 = vsel %vm31, %v88, 0
    %91 = vmatprep.subr.mxu0 0.0
    %92 = vmatpush1.msra.mxu0 %v76
    %93 = vmatprep.subr.mxu0 0.0
    %94 = vmatpush1.msra.mxu0 %v77
    %95 = vmatprep.subr.mxu0 0.0
    %96 = vmatpush1.msra.mxu0 0.0
    %97 = vmatprep.subr.mxu0 0.0
    %98 = vmatpush1.msra.mxu0 0.0
    %99 = vmatprep.subr.mxu0 0.0
    %100 = vmatpush1.msra.mxu0 0.0
    %101 = vmatprep.subr.mxu0 0.0
    %102 = vmatpush1.msra.mxu0 0.0
    %103 = vmatprep.subr.mxu0 0.0
    %104 = vmatpush1.msra.mxu0 0.0
    %105 = vmatprep.subr.mxu0 0.0
    %106 = vmatpush1.msra.mxu0 0.0
    %107 = vmatprep.subr.mxu0 0.0
    %108 = vmatpush1.msra.mxu0 0.0
    %109 = vmatprep.subr.mxu0 0.0
    %110 = vmatpush1.msra.mxu0 0.0
    %111 = vmatprep.subr.mxu0 0.0
    %112 = vmatpush1.msra.mxu0 0.0
    %113 = vmatprep.subr.mxu0 0.0
    %114 = vmatpush1.msra.mxu0 0.0
    %115 = vmatprep.subr.mxu0 0.0
    %116 = vmatpush1.msra.mxu0 0.0
    %117 = vmatprep.subr.mxu0 0.0
    %118 = vmatpush1.msra.mxu0 0.0
    %119 = vmatprep.subr.mxu0 0.0
    %120 = vmatpush1.msra.mxu0 0.0
    %121 = vmatprep.subr.mxu0 0.0
    %122 = vmatpush1.msra.mxu0 0.0
    %123 = vmatprep.subr.mxu0 0.0
    %124 = vmatpush1.msra.mxu0 0.0
    %125 = vmatprep.subr.mxu0 0.0
    %126 = vmatpush1.msra.mxu0 0.0
    %127 = vmatprep.subr.mxu0 0.0
    %128 = vmatpush1.msra.mxu0 0.0
    %129 = vmatprep.subr.mxu0 0.0
    %130 = vmatpush1.msra.mxu0 0.0
    %131 = vmatprep.subr.mxu0 0.0
    %132 = vmatpush1.msra.mxu0 0.0
    %133 = vmatprep.subr.mxu0 0.0
    %134 = vmatpush1.msra.mxu0 0.0
    %135 = vmatprep.subr.mxu0 0.0
    %136 = vmatpush1.msra.mxu0 0.0
    %137 = vmatprep.subr.mxu0 0.0
    %138 = vmatpush1.msra.mxu0 0.0
    %139 = vmatprep.subr.mxu0 0.0
    %140 = vmatpush1.msra.mxu0 0.0
    %141 = vmatprep.subr.mxu0 0.0
    %142 = vmatpush1.msra.mxu0 0.0
    %143 = vmatprep.subr.mxu0 0.0
    %144 = vmatpush1.msra.mxu0 0.0
    %145 = vmatprep.subr.mxu0 0.0
    %146 = vmatpush1.msra.mxu0 0.0
    %147 = vmatprep.subr.mxu0 0.0
    %148 = vmatpush1.msra.mxu0 0.0
    %149 = vmatprep.subr.mxu0 0.0
    %150 = vmatpush1.msra.mxu0 0.0
    %151 = vmatprep.subr.mxu0 0.0
    %152 = vmatpush1.msra.mxu0 0.0
    %153 = vmatprep.subr.mxu0 0.0
    %154 = vmatpush1.msra.mxu0 0.0
    %155 = vmatprep.mubr.f32.mxu0 0.0
    %156 = vmatmul.mubr.f32.gmra.mrb[0].mxu0 %v89
    %v157 = vpop.f32.mrb[0].mxu0
    %v158 = vadd.f32 %v83, %v157
    %v159 = vpop.f32.mrb[0].mxu0
    %160 = vdwg.mxu0
    %161 = vst [vmem:[#allocation2] sm:$0x3] %v158
    // Predicated region
    $region14: #{tpu_custom_call.1} parent=1 // pred_check
      _
    $region15: #{tpu_custom_call.1} parent=1 // pred_check_branch
      %163 = sbr.rel (0) target = $region17
    $region16: #{tpu_custom_call.1} parent=1 // pred_region
      %s165 = ssub.s32 32, 32
      %166 = vsyncadd [#allocation3], %s165
      %s168 = sshll.u32 [#allocation2], 4
      %s169 = int_to_ptr.vmem [resolvable:$true] %s168
      %171 = dma.vmem_to_hbm [thread:$0]  %s169, 32, %s3, [#allocation3]
    $region17: #{tpu_custom_call.1} parent=1 // pred_fallthru
      _
    // Predicated region
    $region18: #{tpu_custom_call.1} parent=1 // pred_check
      _
    $region19: #{tpu_custom_call.1} parent=1 // pred_check_branch
      %173 = sbr.rel (0) target = $region21
    $region20: #{tpu_custom_call.1} parent=1 // pred_region
      %174 = dma.done [#allocation3], 32
    $region21: #{tpu_custom_call.1} parent=1 // pred_fallthru
      _
    %175 = vsyncpa [#allocation3], 1

</llo_original>
